<compile_context>
chip_gen: v6e
topology: v6e:2x2x1
jax: 0.10.0
libtpu: 0.0.40
codegen_flags: <defaults>
</compile_context>

<pallas_src>
import functools

import jax
import jax.numpy as jnp
from jax.experimental import pallas as pl
from jax.experimental.pallas import tpu as pltpu

_EPS = 1e-5
_SUBLANE = 8


def _round_up(n, m):
    return ((n + m - 1) // m) * m


def _full_spec(shape):
    """Whole-array VMEM block (weights / biases / folded-BN params)."""
    nd = len(shape)
    return pl.BlockSpec(shape, lambda *_: (0,) * nd)


def _row_mask(tile_rows, row_offset, valid_rows):
    """(tile_rows, 1) f32 mask: 1.0 for global rows < valid_rows, else 0.0."""
    rows = jax.lax.broadcasted_iota(jnp.int32, (tile_rows, 1), 0) + row_offset
    return (rows < valid_rows).astype(jnp.float32)


# ---------- stats pass 1: sum / sumsq of h1 = relu(x @ W1 + b1) over batch ----
def _stats1_kernel(x_ref, w1_ref, b1_ref, sum_ref, sq_ref, *, valid_rows):
    @pl.when(pl.program_id(1) == 0)
    def _():
        sum_ref[...] = jnp.zeros_like(sum_ref)
        sq_ref[...] = jnp.zeros_like(sq_ref)

    tm = x_ref.shape[0]
    tile_id = pl.program_id(0) * pl.num_programs(1) + pl.program_id(1)
    mask = _row_mask(tm, tile_id * tm, valid_rows)

    x = x_ref[...].astype(jnp.float32)
    h = jnp.dot(x, w1_ref[...], preferred_element_type=jnp.float32) + b1_ref[...]
    h = jnp.maximum(h, 0.0) * mask
    sum_ref[...] += jnp.sum(h, axis=0, keepdims=True)[None]
    sq_ref[...] += jnp.sum(h * h, axis=0, keepdims=True)[None]


# ---- stats pass 2: sum / sumsq of h2 = tanh(bn1(h1) @ W2 + b2) over batch ----
def _stats2_kernel(x_ref, w1_ref, b1_ref, s1_ref, t1_ref, w2_ref, b2_ref,
                   sum_ref, sq_ref, *, valid_rows):
    @pl.when(pl.program_id(1) == 0)
    def _():
        sum_ref[...] = jnp.zeros_like(sum_ref)
        sq_ref[...] = jnp.zeros_like(sq_ref)

    tm = x_ref.shape[0]
    tile_id = pl.program_id(0) * pl.num_programs(1) + pl.program_id(1)
    mask = _row_mask(tm, tile_id * tm, valid_rows)

    x = x_ref[...].astype(jnp.float32)
    h = jnp.dot(x, w1_ref[...], preferred_element_type=jnp.float32) + b1_ref[...]
    h = jnp.maximum(h, 0.0)
    h = h * s1_ref[...] + t1_ref[...]                      # folded BatchNorm1d #1
    h = jnp.dot(h, w2_ref[...], preferred_element_type=jnp.float32) + b2_ref[...]
    h = jnp.tanh(h) * mask
    sum_ref[...] += jnp.sum(h, axis=0, keepdims=True)[None]
    sq_ref[...] += jnp.sum(h * h, axis=0, keepdims=True)[None]


# ------------------------- main kernel (fully parallel) -----------------------
def _mlp_kernel(x_ref, w1_ref, b1_ref, s1_ref, t1_ref,
                w2_ref, b2_ref, s2_ref, t2_ref,
                w3_ref, b3_ref, o_ref):
    x = x_ref[...].astype(jnp.float32)
    # Block 1: Linear -> ReLU -> BatchNorm1d (folded scale/shift) -> Dropout(id)
    h = jnp.dot(x, w1_ref[...], preferred_element_type=jnp.float32) + b1_ref[...]
    h = jnp.maximum(h, 0.0)
    h = h * s1_ref[...] + t1_ref[...]
    # Block 2: Linear -> Tanh -> BatchNorm1d (folded) -> Dropout(id)
    h = jnp.dot(h, w2_ref[...], preferred_element_type=jnp.float32) + b2_ref[...]
    h = jnp.tanh(h)
    h = h * s2_ref[...] + t2_ref[...]
    # Output: Linear (out_dim=8 columns only) -> Sigmoid.
    h = jnp.dot(h, w3_ref[...], preferred_element_type=jnp.float32) + b3_ref[...]
    o_ref[...] = jax.nn.sigmoid(h).astype(o_ref.dtype)


# --------------------------------- wrapper -----------------------------------
def _pick_tile(batch, target):
    """~target rows, sublane-aligned, near-equal tiles so row padding is at
    most one (small) partial tile's worth."""
    target = max(_SUBLANE, _round_up(target, _SUBLANE))
    n_steps = -(-batch // target)
    return _round_up(-(-batch // n_steps), _SUBLANE)


def _vmem_limit_bytes(tm, in_dim, out_cols, small_arrays):
    """Double-buffered block footprint + constants + margin (documents the
    VMEM budget; well under the 16/32 MiB scoped defaults, 64 MiB v7x phys)."""
    block = 4 * tm * (in_dim + out_cols)
    small = sum(int(a.size) * a.dtype.itemsize for a in small_arrays)
    return int(min(64 << 20, max(4 << 20, 2 * (block + small) + (1 << 20))))


def _run_stats(kernel, xp, small_args, h_dim, tm, batch, n_tiles, vmem_bytes):
    """Masked sum / sumsq over the real `batch` rows, split 2-way on a leading
    'parallel' grid axis (megacore on v7x); partials reduced in the wrapper."""
    in_dim = xp.shape[1]
    per_split = -(-n_tiles // 2)

    def x_map(s, i):
        # Clamp so a possible overrun iteration (odd n_tiles) re-reads a valid
        # tile; its contribution is zeroed by the in-kernel row mask.
        return (jnp.minimum(s * per_split + i, n_tiles - 1), 0)

    in_specs = [pl.BlockSpec((tm, in_dim), x_map)]
    in_specs += [_full_spec(a.shape) for a in small_args]
    out_spec = pl.BlockSpec((1, 1, h_dim), lambda s, i: (s, 0, 0))

    s_part, sq_part = pl.pallas_call(
        functools.partial(kernel, valid_rows=batch),
        grid=(2, per_split),
        in_specs=in_specs,
        out_specs=(out_spec, out_spec),
        out_shape=(jax.ShapeDtypeStruct((2, 1, h_dim), jnp.float32),
                   jax.ShapeDtypeStruct((2, 1, h_dim), jnp.float32)),
        compiler_params=pltpu.CompilerParams(
            dimension_semantics=("parallel", "arbitrary"),
            vmem_limit_bytes=vmem_bytes),
    )(xp, *small_args)

    s = jnp.sum(s_part, axis=(0, 1))[None, :]     # (1, h_dim)
    sq = jnp.sum(sq_part, axis=(0, 1))[None, :]
    mu = s / batch
    # TODO(synk): single-pass sum/sumsq variance can lose precision when
    # |mean| >> std; a shifted/compensated accumulation would fix it.
    var = jnp.maximum(sq / batch - mu * mu, 0.0)   # biased variance (train BN)
    return mu, var


def _fold_bn(gamma, beta, mu, var, eps=_EPS):
    scale = gamma * jax.lax.rsqrt(var + eps)
    shift = beta - mu * scale
    return scale, shift


def neural_net_forward(x, params, tm=8192):
    """x: [batch, in_features] float32 (or bf16).  params: dict (see init_params)."""
    batch, in_dim = x.shape
    h1 = params["w1"].shape[1]
    h2 = params["w2"].shape[1]
    out_dim = params["w3"].shape[1]
    apply_bn = batch != 1       # matches the `if x.size(0) == 1: continue` BN skip

    tm = _pick_tile(batch, tm)
    padded = _round_up(batch, tm)
    n_tiles = padded // tm
    xp = x if padded == batch else jnp.pad(x, ((0, padded - batch), (0, 0)))

    if apply_bn:
        small1 = (params["w1"], params["b1"])
        mu1, var1 = _run_stats(_stats1_kernel, xp, small1, h1, tm, batch,
                               n_tiles, _vmem_limit_bytes(tm, in_dim, h1, small1))
        s1, t1 = _fold_bn(params["g1"], params["be1"], mu1, var1)
        small2 = (params["w1"], params["b1"], s1, t1, params["w2"], params["b2"])
        mu2, var2 = _run_stats(_stats2_kernel, xp, small2, h2, tm, batch,
                               n_tiles, _vmem_limit_bytes(tm, in_dim, h2, small2))
        s2, t2 = _fold_bn(params["g2"], params["be2"], mu2, var2)
    else:
        s1 = jnp.ones((1, h1), jnp.float32)
        t1 = jnp.zeros((1, h1), jnp.float32)
        s2 = jnp.ones((1, h2), jnp.float32)
        t2 = jnp.zeros((1, h2), jnp.float32)

    small = (params["w1"], params["b1"], s1, t1,
             params["w2"], params["b2"], s2, t2,
             params["w3"], params["b3"])
    in_specs = [pl.BlockSpec((tm, in_dim), lambda i: (i, 0))]
    in_specs += [_full_spec(a.shape) for a in small]

    out = pl.pallas_call(
        _mlp_kernel,
        grid=(n_tiles,),
        in_specs=in_specs,
        out_specs=pl.BlockSpec((tm, out_dim), lambda i: (i, 0)),
        out_shape=jax.ShapeDtypeStruct((padded, out_dim), jnp.float32),
        compiler_params=pltpu.CompilerParams(
            dimension_semantics=("parallel",),     # megacore-shardable on v7x
            vmem_limit_bytes=_vmem_limit_bytes(tm, in_dim, out_dim, small)),
    )(xp, *small)
    return out if padded == batch else out[:batch]


def init_params(key, layers):
    """Deterministic init matching PyTorch nn.Linear default (U(-1/sqrt(in), 1/sqrt(in))).
    BatchNorm1d: gamma=1, beta=0.  Weights stored as [in, out] (pre-transposed)."""
    params = {}
    names = [("w1", "b1"), ("w2", "b2"), ("w3", "b3")]
    for idx, (wn, bn) in enumerate(names):
        fan_in, fan_out = layers[idx], layers[idx + 1]
        key, kw, kb = jax.random.split(key, 3)
        bound = 1.0 / (fan_in ** 0.5)
        params[wn] = jax.random.uniform(kw, (fan_in, fan_out), jnp.float32,
                                        minval=-bound, maxval=bound)
        params[bn] = jax.random.uniform(kb, (1, fan_out), jnp.float32,
                                        minval=-bound, maxval=bound)
    params["g1"] = jnp.ones((1, layers[1]), jnp.float32)
    params["be1"] = jnp.zeros((1, layers[1]), jnp.float32)
    params["g2"] = jnp.ones((1, layers[2]), jnp.float32)
    params["be2"] = jnp.zeros((1, layers[2]), jnp.float32)
    return params


def _batchnorm_ref(h, gamma, beta, eps=_EPS):
    mu = jnp.mean(h, axis=0, keepdims=True)
    var = jnp.mean((h - mu) * (h - mu), axis=0, keepdims=True)
    return (h - mu) * jax.lax.rsqrt(var + eps) * gamma + beta


def reference_forward(x, params, apply_bn=True, eps=_EPS):
    """Pure-JAX reference for correctness checking."""
    h = x @ params["w1"] + params["b1"]
    h = jnp.maximum(h, 0.0)
    if apply_bn:
        h = _batchnorm_ref(h, params["g1"], params["be1"], eps)
    h = h @ params["w2"] + params["b2"]
    h = jnp.tanh(h)
    if apply_bn:
        h = _batchnorm_ref(h, params["g2"], params["be2"], eps)
    h = h @ params["w3"] + params["b3"]
    return jax.nn.sigmoid(h)


if __name__ == "__main__":
    layers = [16, 32, 32, 8]
    key = jax.random.PRNGKey(0)
    key, kx = jax.random.split(key)
    params = init_params(key, layers)

    # 1) multi-tile grid + 2-way-split BN-stat accumulation (batch=64, tm=16).
    batch = 64
    x = jax.random.normal(kx, (batch, layers[0]), dtype=jnp.float32)
    out = jax.block_until_ready(neural_net_forward(x, params, tm=16))
    ref = reference_forward(x, params, apply_bn=True)
    assert out.shape == (batch, layers[-1])
    assert jnp.allclose(out, ref, atol=1e-4, rtol=1e-4), "mismatch (batch=64)"

    # 2) ragged batch (not a multiple of 8): exercises row padding + masking.
    xr = x[:37]
    outr = jax.block_until_ready(neural_net_forward(xr, params))
    refr = reference_forward(xr, params, apply_bn=True)
    assert outr.shape == (37, layers[-1])
    assert jnp.allclose(outr, refr, atol=1e-4, rtol=1e-4), "mismatch (batch=37)"

    # 3) batch==1 path: BatchNorm skipped (identity scale/shift).
    x1 = x[:1]
    out1 = jax.block_until_ready(neural_net_forward(x1, params))
    ref1 = reference_forward(x1, params, apply_bn=False)
    assert jnp.allclose(out1, ref1, atol=1e-4, rtol=1e-4), "mismatch (batch=1)"

    print("KERNEL_OK")
</pallas_src>

<mosaic_0001>
module attributes {stable_mosaic.version = 11 : i64} {
  func.func @_stats1_kernel(%arg0: i32, %arg1: i32, %arg2: memref<16x16xf32, #tpu.memory_space<vmem>>, %arg3: memref<16x32xf32, #tpu.memory_space<vmem>>, %arg4: memref<1x32xf32, #tpu.memory_space<vmem>>, %arg5: memref<1x1x32xf32, #tpu.memory_space<vmem>>, %arg6: memref<1x1x32xf32, #tpu.memory_space<vmem>>) attributes {dimension_semantics = [#tpu.dimension_semantics<parallel>, #tpu.dimension_semantics<arbitrary>], iteration_bounds = array<i64: 2, 2>, scalar_prefetch = 0 : i64, scratch_operands = 0 : i64, tpu.core_type = #tpu.core_type<tc>, window_params = [{transform_indices = @transform_0, window_bounds = array<i64: 16, 16>}, {pipeline_mode = #tpu.pipeline_mode<synchronous>, transform_indices = @transform_1, window_bounds = array<i64: 16, 32>}, {pipeline_mode = #tpu.pipeline_mode<synchronous>, transform_indices = @transform_2, window_bounds = array<i64: 1, 32>}, {transform_indices = @transform_3, window_bounds = array<i64: 1, 1, 32>}, {transform_indices = @transform_4, window_bounds = array<i64: 1, 1, 32>}]} {
    %c0_i32 = arith.constant 0 : i32
    %0 = arith.cmpi eq, %arg1, %c0_i32 : i32
    %1 = arith.extui %0 : i1 to i32
    %c0_i32_0 = arith.constant 0 : i32
    %2 = arith.cmpi ne, %1, %c0_i32_0 : i32
    scf.if %2 {
      %cst_21 = arith.constant 0.000000e+00 : f32
      %36 = vector.broadcast %cst_21 : f32 to vector<1x1x32xf32>
      %c0_22 = arith.constant 0 : index
      %c0_23 = arith.constant 0 : index
      %c0_24 = arith.constant 0 : index
      %37 = vector.load %arg5[%c0_22, %c0_23, %c0_24] : memref<1x1x32xf32, #tpu.memory_space<vmem>>, vector<1x1x32xf32>
      tpu.vector_store %arg5[%c0_22, %c0_23, %c0_24], %36 {strides = array<i32>} : memref<1x1x32xf32, #tpu.memory_space<vmem>>, vector<1x1x32xf32>,
      %cst_25 = arith.constant 0.000000e+00 : f32
      %38 = vector.broadcast %cst_25 : f32 to vector<1x1x32xf32>
      %c0_26 = arith.constant 0 : index
      %c0_27 = arith.constant 0 : index
      %c0_28 = arith.constant 0 : index
      %39 = vector.load %arg6[%c0_26, %c0_27, %c0_28] : memref<1x1x32xf32, #tpu.memory_space<vmem>>, vector<1x1x32xf32>
      tpu.vector_store %arg6[%c0_26, %c0_27, %c0_28], %38 {strides = array<i32>} : memref<1x1x32xf32, #tpu.memory_space<vmem>>, vector<1x1x32xf32>,
    } else {
    }
    %c2_i32 = arith.constant 2 : i32
    %3 = arith.muli %arg0, %c2_i32 : i32
    %4 = arith.addi %3, %arg1 : i32
    %c16_i32 = arith.constant 16 : i32
    %5 = arith.muli %4, %c16_i32 : i32
    %6 = tpu.iota {dimensions = array<i32: 0>} : vector<16x1xi32>
    %7 = vector.broadcast %5 : i32 to vector<16x1xi32>
    %8 = arith.addi %6, %7 : vector<16x1xi32>
    %c64_i32 = arith.constant 64 : i32
    %9 = vector.broadcast %c64_i32 : i32 to vector<16x1xi32>
    %10 = arith.cmpi slt, %8, %9 : vector<16x1xi32>
    %11 = arith.extui %10 : vector<16x1xi1> to vector<16x1xi32>
    %12 = arith.sitofp %11 : vector<16x1xi32> to vector<16x1xf32>
    %c0 = arith.constant 0 : index
    %c0_1 = arith.constant 0 : index
    %13 = vector.load %arg2[%c0, %c0_1] : memref<16x16xf32, #tpu.memory_space<vmem>>, vector<16x16xf32>
    %c0_2 = arith.constant 0 : index
    %c0_3 = arith.constant 0 : index
    %14 = vector.load %arg3[%c0_2, %c0_3] : memref<16x32xf32, #tpu.memory_space<vmem>>, vector<16x32xf32>
    %cst = arith.constant dense<0.000000e+00> : vector<16x32xf32>
    %15 = tpu.matmul %13, %14, %cst {dimension_numbers = #tpu.dot_dimension_numbers<[1], [0], [0], [1], [0, 0, 1, 1], [], []>} : vector<16x16xf32>, vector<16x32xf32>, vector<16x32xf32> -> vector<16x32xf32>
    %c0_4 = arith.constant 0 : index
    %c0_5 = arith.constant 0 : index
    %16 = vector.load %arg4[%c0_4, %c0_5] : memref<1x32xf32, #tpu.memory_space<vmem>>, vector<1x32xf32>
    %17 = vector.broadcast %16 : vector<1x32xf32> to vector<16x32xf32>
    %18 = arith.addf %15, %17 : vector<16x32xf32>
    %cst_6 = arith.constant 0.000000e+00 : f32
    %19 = vector.broadcast %cst_6 : f32 to vector<16x32xf32>
    %20 = arith.maximumf %18, %19 : vector<16x32xf32>
    %21 = vector.broadcast %12 : vector<16x1xf32> to vector<16x32xf32>
    %22 = arith.mulf %20, %21 : vector<16x32xf32>
    %c0_7 = arith.constant 0 : index
    %c0_8 = arith.constant 0 : index
    %c0_9 = arith.constant 0 : index
    %23 = vector.load %arg5[%c0_7, %c0_8, %c0_9] : memref<1x1x32xf32, #tpu.memory_space<vmem>>, vector<1x1x32xf32>
    %cst_10 = arith.constant dense<0.000000e+00> : vector<32xf32>
    %24 = vector.multi_reduction <add>, %22, %cst_10 [0] : vector<16x32xf32> to vector<32xf32>
    %25 = vector.shape_cast %24 : vector<32xf32> to vector<1x32xf32>
    %26 = vector.shape_cast %25 : vector<1x32xf32> to vector<1x1x32xf32>
    %27 = arith.addf %23, %26 : vector<1x1x32xf32>
    %c0_11 = arith.constant 0 : index
    %c0_12 = arith.constant 0 : index
    %c0_13 = arith.constant 0 : index
    %28 = vector.load %arg5[%c0_11, %c0_12, %c0_13] : memref<1x1x32xf32, #tpu.memory_space<vmem>>, vector<1x1x32xf32>
    tpu.vector_store %arg5[%c0_11, %c0_12, %c0_13], %27 {strides = array<i32>} : memref<1x1x32xf32, #tpu.memory_space<vmem>>, vector<1x1x32xf32>,
    %c0_14 = arith.constant 0 : index
    %c0_15 = arith.constant 0 : index
    %c0_16 = arith.constant 0 : index
    %29 = vector.load %arg6[%c0_14, %c0_15, %c0_16] : memref<1x1x32xf32, #tpu.memory_space<vmem>>, vector<1x1x32xf32>
    %30 = arith.mulf %22, %22 : vector<16x32xf32>
    %cst_17 = arith.constant dense<0.000000e+00> : vector<32xf32>
    %31 = vector.multi_reduction <add>, %30, %cst_17 [0] : vector<16x32xf32> to vector<32xf32>
    %32 = vector.shape_cast %31 : vector<32xf32> to vector<1x32xf32>
    %33 = vector.shape_cast %32 : vector<1x32xf32> to vector<1x1x32xf32>
    %34 = arith.addf %29, %33 : vector<1x1x32xf32>
    %c0_18 = arith.constant 0 : index
    %c0_19 = arith.constant 0 : index
    %c0_20 = arith.constant 0 : index
    %35 = vector.load %arg6[%c0_18, %c0_19, %c0_20] : memref<1x1x32xf32, #tpu.memory_space<vmem>>, vector<1x1x32xf32>
    tpu.vector_store %arg6[%c0_18, %c0_19, %c0_20], %34 {strides = array<i32>} : memref<1x1x32xf32, #tpu.memory_space<vmem>>, vector<1x1x32xf32>,
    return
  }
  func.func @transform_0(%arg0: i32, %arg1: i32) -> (i32, i32) {
    %c2_i32 = arith.constant 2 : i32
    %0 = arith.muli %arg0, %c2_i32 : i32
    %1 = arith.addi %0, %arg1 : i32
    %c3_i32 = arith.constant 3 : i32
    %2 = arith.minsi %1, %c3_i32 : i32
    %c0_i32 = arith.constant 0 : i32
    %c0_i32_0 = arith.constant 0 : i32
    return %2, %c0_i32 : i32, i32
  }
  func.func @transform_1(%arg0: i32, %arg1: i32) -> (i32, i32) {
    %c0_i32 = arith.constant 0 : i32
    %c0_i32_0 = arith.constant 0 : i32
    %c0_i32_1 = arith.constant 0 : i32
    return %c0_i32, %c0_i32_0 : i32, i32
  }
  func.func @transform_2(%arg0: i32, %arg1: i32) -> (i32, i32) {
    %c0_i32 = arith.constant 0 : i32
    %c0_i32_0 = arith.constant 0 : i32
    %c0_i32_1 = arith.constant 0 : i32
    return %c0_i32, %c0_i32_0 : i32, i32
  }
  func.func @transform_3(%arg0: i32, %arg1: i32) -> (i32, i32, i32) {
    %c0_i32 = arith.constant 0 : i32
    %c0_i32_0 = arith.constant 0 : i32
    %c0_i32_1 = arith.constant 0 : i32
    return %arg0, %c0_i32, %c0_i32_0 : i32, i32, i32
  }
  func.func @transform_4(%arg0: i32, %arg1: i32) -> (i32, i32, i32) {
    %c0_i32 = arith.constant 0 : i32
    %c0_i32_0 = arith.constant 0 : i32
    %c0_i32_1 = arith.constant 0 : i32
    return %arg0, %c0_i32, %c0_i32_0 : i32, i32, i32
  }
}

</mosaic_0001>

<llo_original>
// kernel: tpu_custom_call.1
$region0: #{tpu_custom_call.1}
  #allocation0 [shape = 'u32[]', space=smem, size = 0x4, offset = 0x4, fixed_abs, tag = 'smem constant byte address 0x4 - core index']
  #allocation1 [shape = 'u32[144,128]{1,0:T(1,128)}', space=vmem, size = 0x12000, scoped, tag = 'internal scratch']
  %s0 = inlined_call_operand.vmem [shape: f32[64,16], index: 0, kind: input, shape index: {}]
  %s1 = inlined_call_operand.vmem [shape: f32[16,32], index: 1, kind: input, shape index: {}]
  %s2 = inlined_call_operand.vmem [shape: f32[1,32], index: 2, kind: input, shape index: {}]
  %s3 = inlined_call_operand.hbm [shape: f32[2,1,32], index: 3, kind: output, shape index: {0}]
  %s4 = inlined_call_operand.hbm [shape: f32[2,1,32], index: 4, kind: output, shape index: {1}]
  %5 = xla_tuple %s3, %s4
  %s6 = sld [smem:[#allocation0]]
  $region57: #{tpu_custom_call.1} parent=0
    _
  %s8 = ssub.s32 1, %s6
  %s9 = scalar_select 0, %s8, %s6
  $region1: #{tpu_custom_call.1} parent=0
    #allocation2 [shape = 'u8[1024]{0}', space=vmem, size = 0x400, scoped, tag = 'output window, operand 0']
    #allocation3 [shape = 's32[2]{0}', space=sflag, size = 0x8, scoped, tag = 'scoped memory for tpu_custom_call.1']
    #allocation4 [shape = 'u8[1024]{0}', space=vmem, size = 0x400, scoped, tag = 'output window, operand 1']
    #allocation5 [shape = 's32[2]{0}', space=sflag, size = 0x8, scoped, tag = 'scoped memory for tpu_custom_call.1']
    %10 = vsyncpa [#allocation3], 0
    %s11 = scalar_lea.sflag [#allocation3], 1
    %12 = vsyncpa %s11, 0
    %13 = vsyncpa [#allocation5], 0
    %s14 = scalar_lea.sflag [#allocation5], 1
    %15 = vsyncpa %s14, 0
    loop: start=0, step=1, limit=6
    $region2: #{tpu_custom_call.1} parent=1 // loop_pre_header
      _
    $region3: #{tpu_custom_call.1} parent=1 // loop_header
      %s17 = sphi 0, %s21
      %p18 = scmp.ge.s32.totalorder %s17, 6
      %s24 = sphi 0, %s36
      %s25 = sphi 0, %s32
      %s26 = sphi 0, %s24
      %s27 = sphi 0, %s25
      %s28 = sphi 0, %s26
      %s29 = sphi 0, %s27
      %s47 = sphi 0, %s49
      %s50 = sphi 0, %s47
      %s51 = sphi 0, %s50
      %s67 = sphi 0, %s51
      %s71 = sphi 0, %s71
      %s73 = sphi 0, %s71
      %s74 = sphi 0, %s73
      %s88 = sphi 0, %s74
      %s92 = sphi 0, %s92
      %s94 = sphi 0, %s92
      %s95 = sphi 0, %s94
      %s109 = sphi 0, %s95
      %s115 = sphi 0, %s117
      %s118 = sphi 0, %s115
      %s119 = sphi 0, %s118
      %s135 = sphi 0, %s119
      %s141 = sphi 0, %s143
      %s144 = sphi 0, %s141
      %s145 = sphi 0, %s144
      %s161 = sphi 0, %s145
    $region4: #{tpu_custom_call.1} parent=1 // loop_header_branch
      %20 = sbr.rel (%p18) target = $region8
    $region5: #{tpu_custom_call.1} parent=1 // loop_body
      %s22 = ssub.s32 %s17, 1
      %s23 = ssub.s32 %s17, 2
      %s30 = sadd.s32 1, %s25
      %p31 = scmp.ge.s32.totalorder %s30, 2
      %s32 = scalar_select %p31, 0, %s30
      %s33 = sadd.s32 1, %s24
      %s34 = scalar_select %p31, %s33, %s24
      %p35 = scmp.ge.s32.totalorder %s34, 2
      %s36 = scalar_select %p35, 0, %s34
      %s37 = smul.u32 %s24, 2
      %s38 = sadd.s32 %s37, %s25
      %p39 = scmp.lt.s32.totalorder %s38, 3
      %s40 = scalar_select %p39, %s38, 3
      %s41 = smul.u32 %s36, 2
      %s42 = sadd.s32 %s41, %s32
      %p43 = scmp.lt.s32.totalorder %s42, 3
      %s44 = scalar_select %p43, %s42, 3
      %s45 = ssub.s32 %s40, %s44
      %p46 = scmp.eq.s32.totalorder %s45, 0
      %s48 = sadd.s32 %s47, 1
      %s49 = scalar_select %p46, %s47, %s48
      %p52 = pneg %p46
      %p53 = scmp.eq.s32.totalorder %s17, 3
      %p54 = por %p52, %p53
      %p55 = scmp.ne.s32.totalorder %s47, %s50
      %p56 = scmp.eq.s32.totalorder %s17, 0
      %p57 = por %p55, %p56
      %p58 = scmp.ne.s32.totalorder %s47, %s50
      %p59 = scmp.eq.s32.totalorder %s22, 3
      %p60 = por %p58, %p59
      %p61 = scmp.ne.s32.totalorder %s50, %s51
      %p62 = scmp.eq.s32.totalorder %s22, 0
      %p63 = por %p61, %p62
      %p64 = scmp.ne.s32.totalorder %s50, %s51
      %p65 = scmp.eq.s32.totalorder %s23, 3
      %p66 = por %p64, %p65
      %p68 = scmp.ne.s32.totalorder %s51, %s67
      %p69 = scmp.eq.s32.totalorder %s23, 0
      %p70 = por %p68, %p69
      %s72 = sadd.s32 %s71, 1
      %p75 = scmp.eq.s32.totalorder %s17, 3
      %p76 = scmp.ne.s32.totalorder %s71, %s73
      %p77 = scmp.eq.s32.totalorder %s17, 0
      %p78 = por %p76, %p77
      %p79 = scmp.ne.s32.totalorder %s71, %s73
      %p80 = scmp.eq.s32.totalorder %s22, 3
      %p81 = por %p79, %p80
      %p82 = scmp.ne.s32.totalorder %s73, %s74
      %p83 = scmp.eq.s32.totalorder %s22, 0
      %p84 = por %p82, %p83
      %p85 = scmp.ne.s32.totalorder %s73, %s74
      %p86 = scmp.eq.s32.totalorder %s23, 3
      %p87 = por %p85, %p86
      %p89 = scmp.ne.s32.totalorder %s74, %s88
      %p90 = scmp.eq.s32.totalorder %s23, 0
      %p91 = por %p89, %p90
      %s93 = sadd.s32 %s92, 1
      %p96 = scmp.eq.s32.totalorder %s17, 3
      %p97 = scmp.ne.s32.totalorder %s92, %s94
      %p98 = scmp.eq.s32.totalorder %s17, 0
      %p99 = por %p97, %p98
      %p100 = scmp.ne.s32.totalorder %s92, %s94
      %p101 = scmp.eq.s32.totalorder %s22, 3
      %p102 = por %p100, %p101
      %p103 = scmp.ne.s32.totalorder %s94, %s95
      %p104 = scmp.eq.s32.totalorder %s22, 0
      %p105 = por %p103, %p104
      %p106 = scmp.ne.s32.totalorder %s94, %s95
      %p107 = scmp.eq.s32.totalorder %s23, 3
      %p108 = por %p106, %p107
      %p110 = scmp.ne.s32.totalorder %s95, %s109
      %p111 = scmp.eq.s32.totalorder %s23, 0
      %p112 = por %p110, %p111
      %s113 = ssub.s32 %s24, %s36
      %p114 = scmp.eq.s32.totalorder %s113, 0
      %s116 = sadd.s32 %s115, 1
      %s117 = scalar_select %p114, %s115, %s116
      %p120 = pneg %p114
      %p121 = scmp.eq.s32.totalorder %s17, 3
      %p122 = por %p120, %p121
      %p123 = scmp.ne.s32.totalorder %s115, %s118
      %p124 = scmp.eq.s32.totalorder %s17, 0
      %p125 = por %p123, %p124
      %p126 = scmp.ne.s32.totalorder %s115, %s118
      %p127 = scmp.eq.s32.totalorder %s22, 3
      %p128 = por %p126, %p127
      %p129 = scmp.ne.s32.totalorder %s118, %s119
      %p130 = scmp.eq.s32.totalorder %s22, 0
      %p131 = por %p129, %p130
      %p132 = scmp.ne.s32.totalorder %s118, %s119
      %p133 = scmp.eq.s32.totalorder %s23, 3
      %p134 = por %p132, %p133
      %p136 = scmp.ne.s32.totalorder %s119, %s135
      %p137 = scmp.eq.s32.totalorder %s23, 0
      %p138 = por %p136, %p137
      %s139 = ssub.s32 %s24, %s36
      %p140 = scmp.eq.s32.totalorder %s139, 0
      %s142 = sadd.s32 %s141, 1
      %s143 = scalar_select %p140, %s141, %s142
      %p146 = pneg %p140
      %p147 = scmp.eq.s32.totalorder %s17, 3
      %p148 = por %p146, %p147
      %p149 = scmp.ne.s32.totalorder %s141, %s144
      %p150 = scmp.eq.s32.totalorder %s17, 0
      %p151 = por %p149, %p150
      %p152 = scmp.ne.s32.totalorder %s141, %s144
      %p153 = scmp.eq.s32.totalorder %s22, 3
      %p154 = por %p152, %p153
      %p155 = scmp.ne.s32.totalorder %s144, %s145
      %p156 = scmp.eq.s32.totalorder %s22, 0
      %p157 = por %p155, %p156
      %p158 = scmp.ne.s32.totalorder %s144, %s145
      %p159 = scmp.eq.s32.totalorder %s23, 3
      %p160 = por %p158, %p159
      %p162 = scmp.ne.s32.totalorder %s145, %s161
      %p163 = scmp.eq.s32.totalorder %s23, 0
      %p164 = por %p162, %p163
      %p165 = scmp.le.s32.totalorder 1, %s17
      %p166 = scmp.lt.s32.totalorder %s17, 5
      %p167 = pnand %p165, %p166
      %p168 = pneg %p167
      // Predicated region
      $region9: #{tpu_custom_call.1} parent=5 // pred_check
        _
      $region10: #{tpu_custom_call.1} parent=5 // pred_check_branch
        %170 = sbr.rel (%p167) target = $region12
      $region11: #{tpu_custom_call.1} parent=5 // pred_region
        %s171 = ssub.s32 %s17, 1
        // Predicated region
        $region13: #{tpu_custom_call.1} parent=11 // pred_check
          %p172 = pneg %p84
        $region14: #{tpu_custom_call.1} parent=11 // pred_check_branch
          %174 = sbr.rel (%p172) target = $region16
        $region15: #{tpu_custom_call.1} parent=11 // pred_region
          _
        $region16: #{tpu_custom_call.1} parent=11 // pred_fallthru
          _
        // Predicated region
        $region17: #{tpu_custom_call.1} parent=11 // pred_check
          %p175 = pneg %p105
        $region18: #{tpu_custom_call.1} parent=11 // pred_check_branch
          %177 = sbr.rel (%p175) target = $region20
        $region19: #{tpu_custom_call.1} parent=11 // pred_region
          _
        $region20: #{tpu_custom_call.1} parent=11 // pred_fallthru
          _
      $region12: #{tpu_custom_call.1} parent=5 // pred_fallthru
        _
      %p178 = scmp.lt.s32.totalorder %s17, 4
      // Predicated region
      $region21: #{tpu_custom_call.1} parent=5 // pred_check
        %p179 = pneg %p178
      $region22: #{tpu_custom_call.1} parent=5 // pred_check_branch
        %181 = sbr.rel (%p179) target = $region24
      $region23: #{tpu_custom_call.1} parent=5 // pred_region
        // Predicated region
        $region25: #{tpu_custom_call.1} parent=23 // pred_check
          %p182 = pneg %p57
        $region26: #{tpu_custom_call.1} parent=23 // pred_check_branch
          %184 = sbr.rel (%p182) target = $region28
        $region27: #{tpu_custom_call.1} parent=23 // pred_region
          %s185 = smul.u32 %s24, 2
          %s186 = sadd.s32 %s185, %s25
          %p187 = scmp.lt.s32.totalorder %s186, 3
          %s188 = scalar_select %p187, %s186, 3
          %s189 = smul.u32 2, %s188
          %p190 = scmp.lt.s32.totalorder %s189, 7
          %s191 = scalar_select %p190, %s189, 7
          %s192 = smul.addr %s191, 8
          %s193 = scalar_lea.vmem %s0, %s192
          %s194 = smul.u32 %s24, 2
          %s195 = sadd.s32 %s194, %s25
          %p196 = scmp.lt.s32.totalorder %s195, 3
          %s197 = scalar_select %p196, %s195, 3
          %s198 = smul.u32 2, %s197
        $region28: #{tpu_custom_call.1} parent=23 // pred_fallthru
          _
      $region24: #{tpu_custom_call.1} parent=5 // pred_fallthru
        _
      %p199 = scmp.le.s32.totalorder 1, %s17
      %p200 = scmp.lt.s32.totalorder %s17, 5
      %p201 = pnand %p199, %p200
      %p202 = pneg %p201
      // Predicated region
      $region29: #{tpu_custom_call.1} parent=5 // pred_check
        _
      $region30: #{tpu_custom_call.1} parent=5 // pred_check_branch
        %204 = sbr.rel (%p201) target = $region32
      $region31: #{tpu_custom_call.1} parent=5 // pred_region
        %s205 = ssub.s32 %s17, 1
        %s206 = smul.u32 %s26, 2
        %s207 = sadd.s32 %s206, %s27
        %p208 = scmp.lt.s32.totalorder %s207, 3
        %s209 = scalar_select %p208, %s207, 3
        %s210 = smul.u32 2, %s209
        %p211 = scmp.lt.s32.totalorder %s210, 7
        %s212 = scalar_select %p211, %s210, 7
        %s213 = smul.addr %s212, 8
        %s214 = scalar_lea.vmem %s0, %s213
        %p215 = pneg %p63
        %p216 = pneg %p60
        %p217 = pneg %p84
        %p218 = pneg %p81
        %p219 = pneg %p105
        %p220 = pneg %p102
        %p221 = pneg %p131
        %p222 = pneg %p128
        %s223 = sand.u32 %s118, 1
        %s224 = scalar_lea.sflag [#allocation3], %s223
        %s225 = sand.u32 %s118, 1
        %s226 = scalar_lea.vmem [#allocation2], %s225
        %p227 = pneg %p157
        %p228 = pneg %p154
        %s229 = sand.u32 %s144, 1
        %s230 = scalar_lea.sflag [#allocation5], %s229
        %s231 = sand.u32 %s144, 1
        %s232 = scalar_lea.vmem [#allocation4], %s231
        %s233 = smul.u32 %s26, 2
        %s234 = sadd.s32 %s233, %s27
        %p235 = scmp.lt.s32.totalorder %s234, 3
        %s236 = scalar_select %p235, %s234, 3
        %s237 = smul.u32 2, %s236
        %p238 = scmp.lt.s32.totalorder %s237, 7
        %s239 = scalar_select %p238, %s237, 7
        %s240 = smul.addr %s239, 8
        %s241 = scalar_lea.vmem %s0, %s240
        %s242 = smul.u32 %s26, 2
        %s243 = sadd.s32 %s242, %s27
        %p244 = scmp.lt.s32.totalorder %s243, 3
        %s245 = scalar_select %p244, %s243, 3
        %s246 = smul.u32 2, %s245
        %p247 = scmp.eq.s32.totalorder %s27, 0
        // Predicated region
        $region33: #{tpu_custom_call.1} parent=31 // pred_check
          %p248 = pneg %p247
        $region34: #{tpu_custom_call.1} parent=31 // pred_check_branch
          %250 = sbr.rel (%p248) target = $region36
        $region35: #{tpu_custom_call.1} parent=31 // pred_region
          %vm251 = vcmask 253952
          %252 = vst.msk [vmem:[%s226] sm:$0x1] %vm251, 0.0
          %253 = vst.msk [vmem:[%s232] sm:$0x1] %vm251, 0.0
        $region36: #{tpu_custom_call.1} parent=31 // pred_fallthru
          _
        %s254 = smul.u32 %s26, 2
        %s255 = sadd.s32 %s254, %s27
        %s256 = smul.u32 %s255, 16
        %v257 = vlaneseq
        %v258 = vshrl.u32 %v257, 7
        %v259 = vadd.s32 %v258, 8
        %v260 = vstv %s256
        %v261 = vadd.s32 %v258, %v260
        %v262 = vadd.s32 %v259, %v260
        %vm263 = vcmp.lt.s32.totalorder %v261, 64
        %vm264 = vcmp.lt.s32.totalorder %v262, 64
        %v265 = vsel %vm263, 1, 0
        %v266 = vsel %vm264, 1, 0
        %v267 = vcvt.s32.f32 %v265
        %v268 = vcvt.s32.f32 %v266
        %v269 = vld [vmem:[%s241] sm:$0xff]
        %v270 = vld [vmem:[%s241 + $0x8] sm:$0xff]
        %v271 = vld [vmem:[%s1] sm:$0xff]
        %v272 = vld [vmem:[%s1 + $0x8] sm:$0xff]
        %v273 = vld [vmem:[%s2] sm:$0x1]
        %v275 = vlaneseq
        %v276 = vshrl.u32 %v275, 7
        %v277 = vsub.s32 0, %v276
        %v278 = vrot.slane %v273, %v277
        %vm280 = vcmask 130048
        %v282 = vsel %vm280, %v269, 0
        %v285 = vsel %vm280, %v270, 0
        %287 = vmatprep.subr.mxu0 0.0
        %288 = vmatpush1.msra.mxu0 0.0
        %289 = vmatprep.subr.mxu0 0.0
        %290 = vmatpush1.msra.mxu0 0.0
        %291 = vmatprep.subr.mxu0 0.0
        %292 = vmatpush1.msra.mxu0 0.0
        %293 = vmatprep.subr.mxu0 0.0
        %294 = vmatpush1.msra.mxu0 0.0
        %295 = vmatprep.subr.mxu0 0.0
        %296 = vmatpush1.msra.mxu0 0.0
        %297 = vmatprep.subr.mxu0 0.0
        %298 = vmatpush1.msra.mxu0 0.0
        %299 = vmatprep.subr.mxu0 0.0
        %300 = vmatpush1.msra.mxu0 0.0
        %301 = vmatprep.subr.mxu0 0.0
        %302 = vmatpush1.msra.mxu0 0.0
        %303 = vmatprep.subr.mxu0 0.0
        %304 = vmatpush1.msra.mxu0 0.0
        %305 = vmatprep.subr.mxu0 0.0
        %306 = vmatpush1.msra.mxu0 0.0
        %307 = vmatprep.subr.mxu0 0.0
        %308 = vmatpush1.msra.mxu0 0.0
        %309 = vmatprep.subr.mxu0 0.0
        %310 = vmatpush1.msra.mxu0 0.0
        %311 = vmatprep.subr.mxu0 0.0
        %312 = vmatpush1.msra.mxu0 0.0
        %313 = vmatprep.subr.mxu0 0.0
        %314 = vmatpush1.msra.mxu0 0.0
        %315 = vmatprep.subr.mxu0 0.0
        %316 = vmatpush1.msra.mxu0 %v272
        %317 = vmatprep.subr.mxu0 0.0
        %318 = vmatpush1.msra.mxu0 %v271
        %319 = vmatprep.subr.mxu0 0.0
        %320 = vmatpush2.msra.mxu0 0.0
        %321 = vmatprep.subr.mxu0 0.0
        %322 = vmatpush2.msra.mxu0 0.0
        %323 = vmatprep.subr.mxu0 0.0
        %324 = vmatpush2.msra.mxu0 0.0
        %325 = vmatprep.subr.mxu0 0.0
        %326 = vmatpush2.msra.mxu0 0.0
        %327 = vmatprep.subr.mxu0 0.0
        %328 = vmatpush2.msra.mxu0 0.0
        %329 = vmatprep.subr.mxu0 0.0
        %330 = vmatpush2.msra.mxu0 0.0
        %331 = vmatprep.subr.mxu0 0.0
        %332 = vmatpush2.msra.mxu0 0.0
        %333 = vmatprep.subr.mxu0 0.0
        %334 = vmatpush2.msra.mxu0 0.0
        %335 = vmatprep.subr.mxu0 0.0
        %336 = vmatpush2.msra.mxu0 0.0
        %337 = vmatprep.subr.mxu0 0.0
        %338 = vmatpush2.msra.mxu0 0.0
        %339 = vmatprep.subr.mxu0 0.0
        %340 = vmatpush2.msra.mxu0 0.0
        %341 = vmatprep.subr.mxu0 0.0
        %342 = vmatpush2.msra.mxu0 0.0
        %343 = vmatprep.subr.mxu0 0.0
        %344 = vmatpush2.msra.mxu0 0.0
        %345 = vmatprep.subr.mxu0 0.0
        %346 = vmatpush2.msra.mxu0 0.0
        %347 = vmatprep.subr.mxu0 0.0
        %348 = vmatpush2.msra.mxu0 0.0
        %349 = vmatprep.subr.mxu0 0.0
        %350 = vmatpush2.msra.mxu0 0.0
        %351 = vmatprep.mubr.f32.mxu0 0.0
        %352 = vmatmul.mubr.f32.gmra.mxu0 %v282
        %v353 = vpop.f32.mrf.mxu0
        %v354 = vadd.f32 %v278, %v353
        %v355 = vpop.f32.mrf.mxu0
        %356 = vmatprep.mubr.f32.mxu0 0.0
        %357 = vmatmul.mubr.f32.gmra.mxu0 %v285
        %v358 = vpop.f32.mrf.mxu0
        %v359 = vadd.f32 %v278, %v358
        %v360 = vpop.f32.mrf.mxu0
        %361 = vdwg.mxu0
        %v362 = vmax.f32 %v354, 0.0
        %v363 = vmax.f32 %v359, 0.0
        %v364 = vmul.f32 %v362, %v267
        %v365 = vmul.f32 %v363, %v268
        %v366 = vld [vmem:[%s226] sm:$0x1]
        %vm367 = vcmask 261120
        %v368 = vsel %vm367, %v364, 0.0
        %v369 = vsel %vm367, %v365, 0.0
        %v370 = vadd.f32 %v368, %v369
        %v371 = vrot.slane %v370, 4
        %v372 = vadd.f32 %v370, %v371
        %v373 = vrot.slane %v372, 2
        %v374 = vadd.f32 %v372, %v373
        %v375 = vrot.slane %v374, 1
        %v376 = vadd.f32 %v374, %v375
        %v377 = vadd.f32 %v366, %v376
        %vm378 = vcmask 253952
        %379 = vst.msk [vmem:[%s226] sm:$0x1] %vm378, %v377
        %v380 = vld [vmem:[%s232] sm:$0x1]
        %v381 = vmul.f32 %v364, %v364
        %v382 = vmul.f32 %v365, %v365
        %v383 = vsel %vm367, %v381, 0.0
        %v384 = vsel %vm367, %v382, 0.0
        %v385 = vadd.f32 %v383, %v384
        %v386 = vrot.slane %v385, 4
        %v387 = vadd.f32 %v385, %v386
        %v388 = vrot.slane %v387, 2
        %v389 = vadd.f32 %v387, %v388
        %v390 = vrot.slane %v389, 1
        %v391 = vadd.f32 %v389, %v390
        %v392 = vadd.f32 %v380, %v391
        %393 = vst.msk [vmem:[%s232] sm:$0x1] %vm378, %v392
        %s394 = sand.u32 %s118, 1
        %s395 = scalar_lea.sflag [#allocation3], %s394
        %s396 = sand.u32 %s118, 1
        %s397 = scalar_lea.vmem [#allocation2], %s396
        %s398 = sand.u32 %s144, 1
        %s399 = scalar_lea.sflag [#allocation5], %s398
        %s400 = sand.u32 %s144, 1
        %s401 = scalar_lea.vmem [#allocation4], %s400
        // Predicated region
        $region37: #{tpu_custom_call.1} parent=31 // pred_check
          %p402 = pneg %p128
        $region38: #{tpu_custom_call.1} parent=31 // pred_check_branch
          %404 = sbr.rel (%p402) target = $region40
        $region39: #{tpu_custom_call.1} parent=31 // pred_region
          %s406 = ssub.s32 16, 16
          %407 = vsyncadd %s395, %s406
          %s408 = smul.addr %s26, 16
          %s409 = scalar_lea.hbm %s3, %s408
          %s411 = sshll.u32 %s397, 4
          %s412 = int_to_ptr.vmem [resolvable:$true] %s411
          %414 = dma.vmem_to_hbm [thread:$0]  %s412, 16, %s409, %s395
        $region40: #{tpu_custom_call.1} parent=31 // pred_fallthru
          _
        // Predicated region
        $region41: #{tpu_custom_call.1} parent=31 // pred_check
          %p415 = pneg %p154
        $region42: #{tpu_custom_call.1} parent=31 // pred_check_branch
          %417 = sbr.rel (%p415) target = $region44
        $region43: #{tpu_custom_call.1} parent=31 // pred_region
          %s419 = ssub.s32 16, 16
          %420 = vsyncadd %s399, %s419
          %s421 = smul.addr %s26, 16
          %s422 = scalar_lea.hbm %s4, %s421
          %s424 = sshll.u32 %s401, 4
          %s425 = int_to_ptr.vmem [resolvable:$true] %s424
          %427 = dma.vmem_to_hbm [thread:$0]  %s425, 16, %s422, %s399
        $region44: #{tpu_custom_call.1} parent=31 // pred_fallthru
          _
      $region32: #{tpu_custom_call.1} parent=5 // pred_fallthru
        _
      %p428 = scmp.le.s32.totalorder 2, %s17
      // Predicated region
      $region45: #{tpu_custom_call.1} parent=5 // pred_check
        %p429 = pneg %p428
      $region46: #{tpu_custom_call.1} parent=5 // pred_check_branch
        %431 = sbr.rel (%p429) target = $region48
      $region47: #{tpu_custom_call.1} parent=5 // pred_region
        %s432 = ssub.s32 %s17, 2
        // Predicated region
        $region49: #{tpu_custom_call.1} parent=47 // pred_check
          %p433 = pneg %p134
        $region50: #{tpu_custom_call.1} parent=47 // pred_check_branch
          %435 = sbr.rel (%p433) target = $region52
        $region51: #{tpu_custom_call.1} parent=47 // pred_region
          %s436 = sand.u32 %s119, 1
          %s437 = scalar_lea.sflag [#allocation3], %s436
          %s438 = sand.u32 %s119, 1
          %s439 = scalar_lea.vmem [#allocation2], %s438
          %440 = dma.done %s437, 16
        $region52: #{tpu_custom_call.1} parent=47 // pred_fallthru
          _
        // Predicated region
        $region53: #{tpu_custom_call.1} parent=47 // pred_check
          %p441 = pneg %p160
        $region54: #{tpu_custom_call.1} parent=47 // pred_check_branch
          %443 = sbr.rel (%p441) target = $region56
        $region55: #{tpu_custom_call.1} parent=47 // pred_region
          %s444 = sand.u32 %s145, 1
          %s445 = scalar_lea.sflag [#allocation5], %s444
          %s446 = sand.u32 %s145, 1
          %s447 = scalar_lea.vmem [#allocation4], %s446
          %448 = dma.done %s445, 16
        $region56: #{tpu_custom_call.1} parent=47 // pred_fallthru
          _
      $region48: #{tpu_custom_call.1} parent=5 // pred_fallthru
        _
    $region6: #{tpu_custom_call.1} parent=1 // loop_footer
      %s21 = sadd.s32 1, %s17
    $region7: #{tpu_custom_call.1} parent=1 // loop_footer_branch
      %16 = sbr.rel target = $region3
    $region8: #{tpu_custom_call.1} parent=1 // loop_exit
      _
    %449 = vsyncpa [#allocation3], 1
    %s450 = scalar_lea.sflag [#allocation3], 1
    %451 = vsyncpa %s450, 1
    %452 = vsyncpa [#allocation5], 1
    %s453 = scalar_lea.sflag [#allocation5], 1
    %454 = vsyncpa %s453, 1

</llo_original>
